<compile_context>
chip_gen: v6e
topology: v6e:2x2x1
jax: 0.10.0
libtpu: 0.0.40
codegen_flags: <defaults>
</compile_context>

<pallas_src>
import functools
import math

import jax
import jax.numpy as jnp
from jax.experimental import pallas as pl
from jax.experimental.pallas import tpu as pltpu


_LANES = 128
_SUBLANES = 8
_TARGET_TILE_R = 2048                 # rows/step: ~3 MiB per x block at D=3 f32
_MAX_BLOCK_BYTES = 8 * 1024 * 1024    # per-buffer cap so large D can't blow VMEM


def _round_up(a: int, m: int) -> int:
    return ((a + m - 1) // m) * m


def _cdiv(a: int, b: int) -> int:
    return -(-a // b)


def _lcm(a: int, b: int) -> int:
    return a * b // math.gcd(a, b)


def _num_tensorcores() -> int:
    # Best effort: v5e / v6e are single-TensorCore chips -> 1 (avoids doubled
    # grid steps and accumulator block swaps).  Anything else (v7x, megacore
    # v4/v5p, unknown) -> 2: always correct, and lets the "parallel" axis be
    # sharded across both TensorCores where they exist.
    try:
        kind = jax.devices()[0].device_kind.lower()
    except Exception:
        return 2
    if any(t in kind for t in ("v5e", "v5 lite", "v6e", "v6 lite")):
        return 1
    return 2


def _shape_reg_kernel(x_ref, s_ref, out_ref, *, ndim: int, tile_r: int,
                      p_rows: int, n_valid):
    c = pl.program_id(0)
    j = pl.program_id(1)

    # Zero the per-core resident accumulator at the start of its chunk walk.
    @pl.when(j == 0)
    def _():
        out_ref[...] = jnp.zeros_like(out_ref)

    groups = tile_r // p_rows

    # Unrolled sum of squared differences over the small coordinate dim.
    # Pure VPU ops on lane-dense slabs; reference block (p_rows, 128) is
    # broadcast over the `groups` axis (p_rows is a multiple of 8, so the
    # reshape is a sublane regrouping -- a layout no-op).
    sq = None
    for d in range(ndim):
        xd = x_ref[d].astype(jnp.float32).reshape(groups, p_rows, _LANES)
        dd = xd - s_ref[d][None, :, :]
        sq = dd * dd if sq is None else sq + dd * dd
    norms = jnp.sqrt(sq).reshape(tile_r, _LANES)          # EUP sqrt

    if n_valid is not None:
        # Mask the zero-padded tail so it contributes exactly 0 to the sum.
        base_row = (c * pl.num_programs(1) + j) * tile_r
        rows = base_row + jax.lax.broadcasted_iota(jnp.int32, (tile_r, _LANES), 0)
        pos = rows * _LANES + jax.lax.broadcasted_iota(jnp.int32, (tile_r, _LANES), 1)
        norms = jnp.where(pos < n_valid, norms, 0.0)

    # Fold into the (1, 8, 128) accumulator: reshape groups sublanes into native
    # (8, 128) tiles and the axis-0 sum is a chain of vreg-wise adds (no XLU).
    part = jnp.sum(norms.reshape(tile_r // _SUBLANES, _SUBLANES, _LANES), axis=0)
    out_ref[...] += part[None, :, :]


def shape_reg(x: jax.Array, shape: jax.Array) -> jax.Array:
    """x: (B, S, D); shape: (1, S, D). Returns scalar float32 mean L2 distance."""
    B, S, D = x.shape
    assert shape.shape == (1, S, D)
    N = B * S

    ncores = _num_tensorcores()
    itemsize = jnp.dtype(x.dtype).itemsize
    sublane_mult = max(_SUBLANES, 32 // itemsize)   # 8 for f32, 16 for bf16

    # Reference pattern period along the flattened point axis, in rows of 128
    # lanes, rounded up to whole sublane tiles.  For S=16: p=1 -> p_rows=8.
    p = S // math.gcd(S, _LANES)
    p_rows = _lcm(p, sublane_mult)

    # Tiling of the flattened point axis: tile_r rows of 128 lanes per step,
    # tile_r a multiple of p_rows so the resident reference block lines up.
    r_needed = _cdiv(N, _LANES)
    per_core = _round_up(_cdiv(r_needed, ncores), p_rows)
    vmem_cap_rows = max(
        p_rows, (_MAX_BLOCK_BYTES // (D * _LANES * itemsize)) // p_rows * p_rows)
    target_rows = max(p_rows, (_TARGET_TILE_R // p_rows) * p_rows)
    tile_r = max(p_rows, min(per_core, target_rows, vmem_cap_rows))
    n_chunks = _cdiv(r_needed, ncores * tile_r)
    r_total = ncores * n_chunks * tile_r
    n_padded = r_total * _LANES

    # Lane-dense relayout of x: (B,S,D) -> (D,N) -> (D, r_total, 128).  The
    # transpose + pad compose into a single XLA copy under jit; the padded tail
    # is masked inside the kernel, so the pad values (zeros) never bias the sum.
    x2 = x.reshape(N, D).T
    if n_padded != N:
        x2 = jnp.pad(x2, ((0, 0), (0, n_padded - N)))
    x3 = x2.reshape(D, r_total, _LANES)

    # Reference built once at its natural period -- no batch broadcast, no
    # N-sized stream.  Position n maps to shape[n % S]; p_rows*128 % S == 0.
    reps = (p_rows * _LANES) // S
    s3 = jnp.tile(shape.reshape(S, D), (reps, 1)).T.reshape(D, p_rows, _LANES)
    s3 = s3.astype(jnp.float32)

    kernel = functools.partial(
        _shape_reg_kernel, ndim=D, tile_r=tile_r, p_rows=p_rows,
        n_valid=(N if n_padded != N else None))

    partials = pl.pallas_call(
        kernel,
        out_shape=jax.ShapeDtypeStruct((ncores, _SUBLANES, _LANES), jnp.float32),
        grid_spec=pltpu.PrefetchScalarGridSpec(
            num_scalar_prefetch=0,
            grid=(ncores, n_chunks),
            in_specs=[
                # Streaming x: one lane-dense chunk per step.
                pl.BlockSpec((D, tile_r, _LANES),
                             lambda c, j: (0, c * n_chunks + j, 0)),
                # Tiny reference: constant index map -> VMEM-resident.
                pl.BlockSpec((D, p_rows, _LANES),
                             lambda c, j: (0, 0, 0)),
            ],
            out_specs=pl.BlockSpec((1, _SUBLANES, _LANES),
                                   lambda c, j: (c, 0, 0)),
        ),
        compiler_params=pltpu.CompilerParams(
            dimension_semantics=("parallel", "arbitrary"),
            vmem_limit_bytes=32 * 1024 * 1024,
        ),
    )(x3, s3)

    # Final tiny reduction of the per-lane partial sums; mean over the true N.
    return jnp.sum(partials) / jnp.float32(N)


if __name__ == "__main__":
    # Small shapes consistent with the module: batch=2, S=16 snake points, D=3.
    B, S, D = 2, 16, 3
    key = jax.random.PRNGKey(0)
    kx, ks = jax.random.split(key)

    x = jax.random.normal(kx, (B, S, D), dtype=jnp.float32)
    # Deterministic "shape" parameter (analog of the tensor passed to __init__),
    # unsqueezed on dim 0 as in the PyTorch module.
    shape_param = jax.random.normal(ks, (S, D), dtype=jnp.float32)[None, :, :]

    result = jax.jit(shape_reg)(x, shape_param)
    result = jax.block_until_ready(result)

    # Pure-JAX reference check of the forward semantics.
    ref = jnp.mean(jnp.linalg.norm(x - shape_param, axis=-1))
    assert jnp.allclose(result, ref, rtol=1e-5, atol=1e-5), (result, ref)

    print("KERNEL_OK")
</pallas_src>

<mosaic_0001>
module attributes {stable_mosaic.version = 11 : i64} {
  func.func @_shape_reg_kernel(%arg0: i32, %arg1: i32, %arg2: memref<3x8x128xf32, #tpu.memory_space<vmem>>, %arg3: memref<3x8x128xf32, #tpu.memory_space<vmem>>, %arg4: memref<1x8x128xf32, #tpu.memory_space<vmem>>) attributes {dimension_semantics = [#tpu.dimension_semantics<parallel>, #tpu.dimension_semantics<arbitrary>], iteration_bounds = array<i64: 2, 1>, scalar_prefetch = 0 : i64, scratch_operands = 0 : i64, tpu.core_type = #tpu.core_type<tc>, window_params = [{transform_indices = @transform_0, window_bounds = array<i64: 3, 8, 128>}, {pipeline_mode = #tpu.pipeline_mode<synchronous>, transform_indices = @transform_1, window_bounds = array<i64: 3, 8, 128>}, {transform_indices = @transform_2, window_bounds = array<i64: 1, 8, 128>}]} {
    %c0_i32 = arith.constant 0 : i32
    %0 = arith.cmpi eq, %arg1, %c0_i32 : i32
    %1 = arith.extui %0 : i1 to i32
    %c0_i32_0 = arith.constant 0 : i32
    %2 = arith.cmpi ne, %1, %c0_i32_0 : i32
    scf.if %2 {
      %cst_23 = arith.constant 0.000000e+00 : f32
      %51 = vector.broadcast %cst_23 : f32 to vector<1x8x128xf32>
      %c0_24 = arith.constant 0 : index
      %c0_25 = arith.constant 0 : index
      %c0_26 = arith.constant 0 : index
      %52 = vector.load %arg4[%c0_24, %c0_25, %c0_26] : memref<1x8x128xf32, #tpu.memory_space<vmem>>, vector<1x8x128xf32>
      tpu.vector_store %arg4[%c0_24, %c0_25, %c0_26], %51 {strides = array<i32>} : memref<1x8x128xf32, #tpu.memory_space<vmem>>, vector<1x8x128xf32>,
    } else {
    }
    %c0 = arith.constant 0 : index
    %c0_1 = arith.constant 0 : index
    %c0_2 = arith.constant 0 : index
    %3 = vector.load %arg2[%c0, %c0_1, %c0_2] : memref<3x8x128xf32, #tpu.memory_space<vmem>>, vector<1x8x128xf32>
    %4 = vector.shape_cast %3 : vector<1x8x128xf32> to vector<8x128xf32>
    %5 = vector.shape_cast %4 : vector<8x128xf32> to vector<1x8x128xf32>
    %c0_3 = arith.constant 0 : index
    %c0_4 = arith.constant 0 : index
    %c0_5 = arith.constant 0 : index
    %6 = vector.load %arg3[%c0_3, %c0_4, %c0_5] : memref<3x8x128xf32, #tpu.memory_space<vmem>>, vector<1x8x128xf32>
    %7 = vector.shape_cast %6 : vector<1x8x128xf32> to vector<8x128xf32>
    %8 = vector.shape_cast %7 : vector<8x128xf32> to vector<1x8x128xf32>
    %9 = arith.subf %5, %8 : vector<1x8x128xf32>
    %10 = arith.mulf %9, %9 : vector<1x8x128xf32>
    %c1 = arith.constant 1 : index
    %c0_6 = arith.constant 0 : index
    %c0_7 = arith.constant 0 : index
    %11 = vector.load %arg2[%c1, %c0_6, %c0_7] : memref<3x8x128xf32, #tpu.memory_space<vmem>>, vector<1x8x128xf32>
    %12 = vector.shape_cast %11 : vector<1x8x128xf32> to vector<8x128xf32>
    %13 = vector.shape_cast %12 : vector<8x128xf32> to vector<1x8x128xf32>
    %c1_8 = arith.constant 1 : index
    %c0_9 = arith.constant 0 : index
    %c0_10 = arith.constant 0 : index
    %14 = vector.load %arg3[%c1_8, %c0_9, %c0_10] : memref<3x8x128xf32, #tpu.memory_space<vmem>>, vector<1x8x128xf32>
    %15 = vector.shape_cast %14 : vector<1x8x128xf32> to vector<8x128xf32>
    %16 = vector.shape_cast %15 : vector<8x128xf32> to vector<1x8x128xf32>
    %17 = arith.subf %13, %16 : vector<1x8x128xf32>
    %18 = arith.mulf %17, %17 : vector<1x8x128xf32>
    %19 = arith.addf %10, %18 : vector<1x8x128xf32>
    %c2 = arith.constant 2 : index
    %c0_11 = arith.constant 0 : index
    %c0_12 = arith.constant 0 : index
    %20 = vector.load %arg2[%c2, %c0_11, %c0_12] : memref<3x8x128xf32, #tpu.memory_space<vmem>>, vector<1x8x128xf32>
    %21 = vector.shape_cast %20 : vector<1x8x128xf32> to vector<8x128xf32>
    %22 = vector.shape_cast %21 : vector<8x128xf32> to vector<1x8x128xf32>
    %c2_13 = arith.constant 2 : index
    %c0_14 = arith.constant 0 : index
    %c0_15 = arith.constant 0 : index
    %23 = vector.load %arg3[%c2_13, %c0_14, %c0_15] : memref<3x8x128xf32, #tpu.memory_space<vmem>>, vector<1x8x128xf32>
    %24 = vector.shape_cast %23 : vector<1x8x128xf32> to vector<8x128xf32>
    %25 = vector.shape_cast %24 : vector<8x128xf32> to vector<1x8x128xf32>
    %26 = arith.subf %22, %25 : vector<1x8x128xf32>
    %27 = arith.mulf %26, %26 : vector<1x8x128xf32>
    %28 = arith.addf %19, %27 : vector<1x8x128xf32>
    %29 = math.sqrt %28 : vector<1x8x128xf32>
    %30 = vector.shape_cast %29 : vector<1x8x128xf32> to vector<8x128xf32>
    %c1_i32 = arith.constant 1 : i32
    %31 = arith.muli %arg0, %c1_i32 : i32
    %32 = arith.addi %31, %arg1 : i32
    %c8_i32 = arith.constant 8 : i32
    %33 = arith.muli %32, %c8_i32 : i32
    %34 = tpu.iota {dimensions = array<i32: 0>} : vector<8x128xi32>
    %35 = vector.broadcast %33 : i32 to vector<8x128xi32>
    %36 = arith.addi %35, %34 : vector<8x128xi32>
    %c128_i32 = arith.constant 128 : i32
    %37 = vector.broadcast %c128_i32 : i32 to vector<8x128xi32>
    %38 = arith.muli %36, %37 : vector<8x128xi32>
    %39 = tpu.iota {dimensions = array<i32: 1>} : vector<8x128xi32>
    %40 = arith.addi %38, %39 : vector<8x128xi32>
    %c32_i32 = arith.constant 32 : i32
    %41 = vector.broadcast %c32_i32 : i32 to vector<8x128xi32>
    %42 = arith.cmpi slt, %40, %41 : vector<8x128xi32>
    %cst = arith.constant 0.000000e+00 : f32
    %43 = vector.broadcast %cst : f32 to vector<8x128xf32>
    %44 = arith.select %42, %30, %43 : vector<8x128xi1>, vector<8x128xf32>
    %45 = vector.shape_cast %44 : vector<8x128xf32> to vector<1x8x128xf32>
    %cst_16 = arith.constant dense<0.000000e+00> : vector<8x128xf32>
    %46 = vector.multi_reduction <add>, %45, %cst_16 [0] : vector<1x8x128xf32> to vector<8x128xf32>
    %c0_17 = arith.constant 0 : index
    %c0_18 = arith.constant 0 : index
    %c0_19 = arith.constant 0 : index
    %47 = vector.load %arg4[%c0_17, %c0_18, %c0_19] : memref<1x8x128xf32, #tpu.memory_space<vmem>>, vector<1x8x128xf32>
    %48 = vector.shape_cast %46 : vector<8x128xf32> to vector<1x8x128xf32>
    %49 = arith.addf %47, %48 : vector<1x8x128xf32>
    %c0_20 = arith.constant 0 : index
    %c0_21 = arith.constant 0 : index
    %c0_22 = arith.constant 0 : index
    %50 = vector.load %arg4[%c0_20, %c0_21, %c0_22] : memref<1x8x128xf32, #tpu.memory_space<vmem>>, vector<1x8x128xf32>
    tpu.vector_store %arg4[%c0_20, %c0_21, %c0_22], %49 {strides = array<i32>} : memref<1x8x128xf32, #tpu.memory_space<vmem>>, vector<1x8x128xf32>,
    return
  }
  func.func @transform_0(%arg0: i32, %arg1: i32) -> (i32, i32, i32) {
    %c1_i32 = arith.constant 1 : i32
    %0 = arith.muli %arg0, %c1_i32 : i32
    %1 = arith.addi %0, %arg1 : i32
    %c0_i32 = arith.constant 0 : i32
    %c0_i32_0 = arith.constant 0 : i32
    %c0_i32_1 = arith.constant 0 : i32
    return %c0_i32, %1, %c0_i32_0 : i32, i32, i32
  }
  func.func @transform_1(%arg0: i32, %arg1: i32) -> (i32, i32, i32) {
    %c0_i32 = arith.constant 0 : i32
    %c0_i32_0 = arith.constant 0 : i32
    %c0_i32_1 = arith.constant 0 : i32
    %c0_i32_2 = arith.constant 0 : i32
    return %c0_i32, %c0_i32_0, %c0_i32_1 : i32, i32, i32
  }
  func.func @transform_2(%arg0: i32, %arg1: i32) -> (i32, i32, i32) {
    %c0_i32 = arith.constant 0 : i32
    %c0_i32_0 = arith.constant 0 : i32
    %c0_i32_1 = arith.constant 0 : i32
    return %arg0, %c0_i32, %c0_i32_0 : i32, i32, i32
  }
}

</mosaic_0001>

<llo_original>
// kernel: tile.7
$region0: #{tile.7}
  %s0 = inlined_call_operand.vmem [shape: f32[64,16,3], index: 0, kind: input, shape index: {}]
  %s1 = inlined_call_operand.vmem [shape: f32[1024,3], index: 1, kind: output, shape index: {}]
  $region1: #{tile.7} parent=0
    #allocation0 [shape = 'u8[32768]{0}', space=vmem, size = 0x8000, scoped, tag = 'scoped mem for output reshape']
    %v2 = vld [vmem:[%s0] ss:$8 sm:$0xf]
    %v3 = vld [vmem:[%s0] ss:$8 sm:$0xf0]
    %vm4 = vcmask 1047556
    %v5 = vsel %vm4, %v3, %v2
    %vm6 = vcmask 130048
    %7 = vst.msk [vmem:[#allocation0] ss:$8 sm:$0xf] %vm6, %v5
    %8 = vst.msk [vmem:[#allocation0] ss:$8 sm:$0xf0] %vm6, %v5
    %s9 = scalar_lea.vmem %s0, 64
    %v10 = vld [vmem:[%s9] ss:$8 sm:$0xf]
    %s11 = scalar_lea.vmem %s0, 64
    %v12 = vld [vmem:[%s11] ss:$8 sm:$0xf0]
    %vm13 = vcmask 1047556
    %v14 = vsel %vm13, %v12, %v10
    %vm15 = vcmask 130048
    %s16 = scalar_lea.vmem [#allocation0], 1
    %17 = vst.msk [vmem:[%s16] ss:$8 sm:$0xf] %vm15, %v14
    %s18 = scalar_lea.vmem [#allocation0], 1
    %19 = vst.msk [vmem:[%s18] ss:$8 sm:$0xf0] %vm15, %v14
    %s20 = scalar_lea.vmem %s0, 128
    %v21 = vld [vmem:[%s20] ss:$8 sm:$0xf]
    %s22 = scalar_lea.vmem %s0, 128
    %v23 = vld [vmem:[%s22] ss:$8 sm:$0xf0]
    %vm24 = vcmask 1047556
    %v25 = vsel %vm24, %v23, %v21
    %vm26 = vcmask 130048
    %s27 = scalar_lea.vmem [#allocation0], 2
    %28 = vst.msk [vmem:[%s27] ss:$8 sm:$0xf] %vm26, %v25
    %s29 = scalar_lea.vmem [#allocation0], 2
    %30 = vst.msk [vmem:[%s29] ss:$8 sm:$0xf0] %vm26, %v25
    %s31 = scalar_lea.vmem %s0, 7
    %v32 = vld [vmem:[%s31] sm:$0x1]
    %s33 = scalar_lea.vmem %s0, 70
    %v34 = vld [vmem:[%s33] sm:$0x2]
    %vm35 = vcmask 1041409
    %v36 = vsel %vm35, %v34, %v32
    %s37 = scalar_lea.vmem %s0, 375
    %s38 = smov 12
    %v39 = vld [vmem:[%s37] ss:$-120 sm:%s38]
    %vm40 = vcmask 1043458
    %v41 = vsel %vm40, %v39, %v36
    %s42 = scalar_lea.vmem %s0, 75
    %v43 = vld [vmem:[%s42] sm:$0x10]
    %vm44 = vcmask 1044484
    %v45 = vsel %vm44, %v43, %v41
    %s46 = scalar_lea.vmem %s0, 743
    %s47 = smov 96
    %v48 = vld [vmem:[%s46] ss:$-120 sm:%s47]
    %vm49 = vcmask 1046533
    %v50 = vsel %vm49, %v48, %v45
    %s51 = scalar_lea.vmem %s0, 80
    %v52 = vld [vmem:[%s51] sm:$0x80]
    %vm53 = vcmask 1047559
    %v54 = vsel %vm53, %v52, %v50
    %55 = vrot.lane.b32.xlu0 %v54, 112
    %v56 = vpop.permute.xlu0 %55
    %vm57 = vcmask 1048448
    %58 = vst.msk [vmem:[#allocation0] sm:$0x7] %vm57, %v56
    %s59 = scalar_lea.vmem [#allocation0], 5
    %60 = vst.msk [vmem:[%s59] sm:$0x38] %vm57, %v56
    %s61 = scalar_lea.vmem [#allocation0], 10
    %62 = vst.msk [vmem:[%s61] sm:$0xc0] %vm57, %v56
    %s63 = scalar_lea.vmem %s0, 39
    %v64 = vld [vmem:[%s63] sm:$0x1]
    %s65 = scalar_lea.vmem %s0, 102
    %v66 = vld [vmem:[%s65] sm:$0x2]
    %vm67 = vcmask 1041409
    %v68 = vsel %vm67, %v66, %v64
    %s69 = scalar_lea.vmem %s0, 407
    %s70 = smov 12
    %v71 = vld [vmem:[%s69] ss:$-120 sm:%s70]
    %vm72 = vcmask 1043458
    %v73 = vsel %vm72, %v71, %v68
    %s74 = scalar_lea.vmem %s0, 107
    %v75 = vld [vmem:[%s74] sm:$0x10]
    %vm76 = vcmask 1044484
    %v77 = vsel %vm76, %v75, %v73
    %s78 = scalar_lea.vmem %s0, 775
    %s79 = smov 96
    %v80 = vld [vmem:[%s78] ss:$-120 sm:%s79]
    %vm81 = vcmask 1046533
    %v82 = vsel %vm81, %v80, %v77
    %s83 = scalar_lea.vmem %s0, 112
    %v84 = vld [vmem:[%s83] sm:$0x80]
    %vm85 = vcmask 1047559
    %v86 = vsel %vm85, %v84, %v82
    %87 = vrot.lane.b32.xlu0 %v86, 112
    %v88 = vpop.permute.xlu0 %87
    %vm89 = vcmask 1048448
    %s90 = scalar_lea.vmem [#allocation0], 32
    %91 = vst.msk [vmem:[%s90] sm:$0x7] %vm89, %v88
    %s92 = scalar_lea.vmem [#allocation0], 37
    %93 = vst.msk [vmem:[%s92] sm:$0x38] %vm89, %v88
    %s94 = scalar_lea.vmem [#allocation0], 42
    %95 = vst.msk [vmem:[%s94] sm:$0xc0] %vm89, %v88
    %s96 = scalar_lea.vmem %s0, 151
    %s97 = smov 3
    %v98 = vld [vmem:[%s96] ss:$-120 sm:%s97]
    %s99 = scalar_lea.vmem %s0, 93
    %v100 = vld [vmem:[%s99] sm:$0x4]
    %vm101 = vcmask 1042434
    %v102 = vsel %vm101, %v100, %v98
    %s103 = scalar_lea.vmem %s0, 87
    %s104 = smov 24
    %v105 = vld [vmem:[%s103] ss:$24 sm:%s104]
    %vm106 = vcmask 1044483
    %v107 = vsel %vm106, %v105, %v102
    %s108 = scalar_lea.vmem %s0, 58
    %v109 = vld [vmem:[%s108] sm:$0x20]
    %vm110 = vcmask 1045509
    %v111 = vsel %vm110, %v109, %v107
    %s112 = scalar_lea.vmem %s0, 121
    %v113 = vld [vmem:[%s112] sm:$0x40]
    %vm114 = vcmask 1046534
    %v115 = vsel %vm114, %v113, %v111
    %s116 = scalar_lea.vmem %s0, 184
    %v117 = vld [vmem:[%s116] sm:$0x80]
    %vm118 = vcmask 1047559
    %v119 = vsel %vm118, %v117, %v115
    %120 = vrot.lane.b32.xlu0 %v119, 112
    %v121 = vpop.permute.xlu0 %120
    %vm122 = vcmask 1048448
    %s123 = scalar_lea.vmem [#allocation0], 18
    %124 = vst.msk [vmem:[%s123] ss:$6 sm:$0x3] %vm122, %v121
    %s125 = scalar_lea.vmem [#allocation0], 23
    %126 = vst.msk [vmem:[%s125] sm:$0xc] %vm122, %v121
    %s127 = scalar_lea.vmem [#allocation0], 26
    %128 = vst.msk [vmem:[%s127] ss:$6 sm:$0x30] %vm122, %v121
    %s129 = scalar_lea.vmem [#allocation0], 51
    %130 = vst.msk [vmem:[%s129] sm:$0xc0] %vm122, %v121
    %s131 = scalar_lea.vmem %s0, 6
    %v132 = vld [vmem:[%s131] sm:$0x1]
    %s133 = scalar_lea.vmem %s0, 69
    %v134 = vld [vmem:[%s133] sm:$0x2]
    %vm135 = vcmask 1041409
    %v136 = vsel %vm135, %v134, %v132
    %s137 = scalar_lea.vmem %s0, 374
    %s138 = smov 12
    %v139 = vld [vmem:[%s137] ss:$-120 sm:%s138]
    %vm140 = vcmask 1043458
    %v141 = vsel %vm140, %v139, %v136
    %s142 = scalar_lea.vmem %s0, 74
    %v143 = vld [vmem:[%s142] sm:$0x10]
    %vm144 = vcmask 1044484
    %v145 = vsel %vm144, %v143, %v141
    %s146 = scalar_lea.vmem %s0, 742
    %s147 = smov 96
    %v148 = vld [vmem:[%s146] ss:$-120 sm:%s147]
    %vm149 = vcmask 1046533
    %v150 = vsel %vm149, %v148, %v145
    %s151 = scalar_lea.vmem %s0, 79
    %v152 = vld [vmem:[%s151] sm:$0x80]
    %vm153 = vcmask 1047559
    %v154 = vsel %vm153, %v152, %v150
    %155 = vrot.lane.b32.xlu0 %v154, 96
    %v156 = vpop.permute.xlu0 %155
    %vm157 = vcmask 917248
    %158 = vst.msk [vmem:[#allocation0] sm:$0x7] %vm157, %v156
    %s159 = scalar_lea.vmem [#allocation0], 5
    %160 = vst.msk [vmem:[%s159] sm:$0x38] %vm157, %v156
    %s161 = scalar_lea.vmem [#allocation0], 10
    %162 = vst.msk [vmem:[%s161] sm:$0xc0] %vm157, %v156
    %s163 = scalar_lea.vmem %s0, 38
    %v164 = vld [vmem:[%s163] sm:$0x1]
    %s165 = scalar_lea.vmem %s0, 101
    %v166 = vld [vmem:[%s165] sm:$0x2]
    %vm167 = vcmask 1041409
    %v168 = vsel %vm167, %v166, %v164
    %s169 = scalar_lea.vmem %s0, 406
    %s170 = smov 12
    %v171 = vld [vmem:[%s169] ss:$-120 sm:%s170]
    %vm172 = vcmask 1043458
    %v173 = vsel %vm172, %v171, %v168
    %s174 = scalar_lea.vmem %s0, 106
    %v175 = vld [vmem:[%s174] sm:$0x10]
    %vm176 = vcmask 1044484
    %v177 = vsel %vm176, %v175, %v173
    %s178 = scalar_lea.vmem %s0, 774
    %s179 = smov 96
    %v180 = vld [vmem:[%s178] ss:$-120 sm:%s179]
    %vm181 = vcmask 1046533
    %v182 = vsel %vm181, %v180, %v177
    %s183 = scalar_lea.vmem %s0, 111
    %v184 = vld [vmem:[%s183] sm:$0x80]
    %vm185 = vcmask 1047559
    %v186 = vsel %vm185, %v184, %v182
    %187 = vrot.lane.b32.xlu0 %v186, 96
    %v188 = vpop.permute.xlu0 %187
    %vm189 = vcmask 917248
    %s190 = scalar_lea.vmem [#allocation0], 32
    %191 = vst.msk [vmem:[%s190] sm:$0x7] %vm189, %v188
    %s192 = scalar_lea.vmem [#allocation0], 37
    %193 = vst.msk [vmem:[%s192] sm:$0x38] %vm189, %v188
    %s194 = scalar_lea.vmem [#allocation0], 42
    %195 = vst.msk [vmem:[%s194] sm:$0xc0] %vm189, %v188
    %s196 = scalar_lea.vmem %s0, 150
    %s197 = smov 3
    %v198 = vld [vmem:[%s196] ss:$-120 sm:%s197]
    %s199 = scalar_lea.vmem %s0, 92
    %v200 = vld [vmem:[%s199] sm:$0x4]
    %vm201 = vcmask 1042434
    %v202 = vsel %vm201, %v200, %v198
    %s203 = scalar_lea.vmem %s0, 86
    %s204 = smov 24
    %v205 = vld [vmem:[%s203] ss:$24 sm:%s204]
    %vm206 = vcmask 1044483
    %v207 = vsel %vm206, %v205, %v202
    %s208 = scalar_lea.vmem %s0, 57
    %v209 = vld [vmem:[%s208] sm:$0x20]
    %vm210 = vcmask 1045509
    %v211 = vsel %vm210, %v209, %v207
    %s212 = scalar_lea.vmem %s0, 120
    %v213 = vld [vmem:[%s212] sm:$0x40]
    %vm214 = vcmask 1046534
    %v215 = vsel %vm214, %v213, %v211
    %s216 = scalar_lea.vmem %s0, 183
    %v217 = vld [vmem:[%s216] sm:$0x80]
    %vm218 = vcmask 1047559
    %v219 = vsel %vm218, %v217, %v215
    %220 = vrot.lane.b32.xlu0 %v219, 96
    %v221 = vpop.permute.xlu0 %220
    %vm222 = vcmask 917248
    %s223 = scalar_lea.vmem [#allocation0], 18
    %224 = vst.msk [vmem:[%s223] ss:$6 sm:$0x3] %vm222, %v221
    %s225 = scalar_lea.vmem [#allocation0], 23
    %226 = vst.msk [vmem:[%s225] sm:$0xc] %vm222, %v221
    %s227 = scalar_lea.vmem [#allocation0], 26
    %228 = vst.msk [vmem:[%s227] ss:$6 sm:$0x30] %vm222, %v221
    %s229 = scalar_lea.vmem [#allocation0], 51
    %230 = vst.msk [vmem:[%s229] sm:$0xc0] %vm222, %v221
    %s231 = scalar_lea.vmem %s0, 5
    %v232 = vld [vmem:[%s231] sm:$0x1]
    %s233 = scalar_lea.vmem %s0, 68
    %v234 = vld [vmem:[%s233] sm:$0x2]
    %vm235 = vcmask 1041409
    %v236 = vsel %vm235, %v234, %v232
    %s237 = scalar_lea.vmem %s0, 373
    %s238 = smov 12
    %v239 = vld [vmem:[%s237] ss:$-120 sm:%s238]
    %vm240 = vcmask 1043458
    %v241 = vsel %vm240, %v239, %v236
    %s242 = scalar_lea.vmem %s0, 73
    %v243 = vld [vmem:[%s242] sm:$0x10]
    %vm244 = vcmask 1044484
    %v245 = vsel %vm244, %v243, %v241
    %s246 = scalar_lea.vmem %s0, 741
    %s247 = smov 96
    %v248 = vld [vmem:[%s246] ss:$-120 sm:%s247]
    %vm249 = vcmask 1046533
    %v250 = vsel %vm249, %v248, %v245
    %s251 = scalar_lea.vmem %s0, 78
    %v252 = vld [vmem:[%s251] sm:$0x80]
    %vm253 = vcmask 1047559
    %v254 = vsel %vm253, %v252, %v250
    %255 = vrot.lane.b32.xlu0 %v254, 80
    %v256 = vpop.permute.xlu0 %255
    %vm257 = vcmask 786048
    %258 = vst.msk [vmem:[#allocation0] sm:$0x7] %vm257, %v256
    %s259 = scalar_lea.vmem [#allocation0], 5
    %260 = vst.msk [vmem:[%s259] sm:$0x38] %vm257, %v256
    %s261 = scalar_lea.vmem [#allocation0], 10
    %262 = vst.msk [vmem:[%s261] sm:$0xc0] %vm257, %v256
    %s263 = scalar_lea.vmem %s0, 37
    %v264 = vld [vmem:[%s263] sm:$0x1]
    %s265 = scalar_lea.vmem %s0, 100
    %v266 = vld [vmem:[%s265] sm:$0x2]
    %vm267 = vcmask 1041409
    %v268 = vsel %vm267, %v266, %v264
    %s269 = scalar_lea.vmem %s0, 405
    %s270 = smov 12
    %v271 = vld [vmem:[%s269] ss:$-120 sm:%s270]
    %vm272 = vcmask 1043458
    %v273 = vsel %vm272, %v271, %v268
    %s274 = scalar_lea.vmem %s0, 105
    %v275 = vld [vmem:[%s274] sm:$0x10]
    %vm276 = vcmask 1044484
    %v277 = vsel %vm276, %v275, %v273
    %s278 = scalar_lea.vmem %s0, 773
    %s279 = smov 96
    %v280 = vld [vmem:[%s278] ss:$-120 sm:%s279]
    %vm281 = vcmask 1046533
    %v282 = vsel %vm281, %v280, %v277
    %s283 = scalar_lea.vmem %s0, 110
    %v284 = vld [vmem:[%s283] sm:$0x80]
    %vm285 = vcmask 1047559
    %v286 = vsel %vm285, %v284, %v282
    %287 = vrot.lane.b32.xlu0 %v286, 80
    %v288 = vpop.permute.xlu0 %287
    %vm289 = vcmask 786048
    %s290 = scalar_lea.vmem [#allocation0], 32
    %291 = vst.msk [vmem:[%s290] sm:$0x7] %vm289, %v288
    %s292 = scalar_lea.vmem [#allocation0], 37
    %293 = vst.msk [vmem:[%s292] sm:$0x38] %vm289, %v288
    %s294 = scalar_lea.vmem [#allocation0], 42
    %295 = vst.msk [vmem:[%s294] sm:$0xc0] %vm289, %v288
    %s296 = scalar_lea.vmem %s0, 149
    %s297 = smov 3
    %v298 = vld [vmem:[%s296] ss:$-120 sm:%s297]
    %s299 = scalar_lea.vmem %s0, 91
    %v300 = vld [vmem:[%s299] sm:$0x4]
    %vm301 = vcmask 1042434
    %v302 = vsel %vm301, %v300, %v298
    %s303 = scalar_lea.vmem %s0, 85
    %s304 = smov 24
    %v305 = vld [vmem:[%s303] ss:$24 sm:%s304]
    %vm306 = vcmask 1044483
    %v307 = vsel %vm306, %v305, %v302
    %s308 = scalar_lea.vmem %s0, 56
    %v309 = vld [vmem:[%s308] sm:$0x20]
    %vm310 = vcmask 1045509
    %v311 = vsel %vm310, %v309, %v307
    %s312 = scalar_lea.vmem %s0, 119
    %v313 = vld [vmem:[%s312] sm:$0x40]
    %vm314 = vcmask 1046534
    %v315 = vsel %vm314, %v313, %v311
    %s316 = scalar_lea.vmem %s0, 182
    %v317 = vld [vmem:[%s316] sm:$0x80]
    %vm318 = vcmask 1047559
    %v319 = vsel %vm318, %v317, %v315
    %320 = vrot.lane.b32.xlu0 %v319, 80
    %v321 = vpop.permute.xlu0 %320
    %vm322 = vcmask 786048
    %s323 = scalar_lea.vmem [#allocation0], 18
    %324 = vst.msk [vmem:[%s323] ss:$6 sm:$0x3] %vm322, %v321
    %s325 = scalar_lea.vmem [#allocation0], 23
    %326 = vst.msk [vmem:[%s325] sm:$0xc] %vm322, %v321
    %s327 = scalar_lea.vmem [#allocation0], 26
    %328 = vst.msk [vmem:[%s327] ss:$6 sm:$0x30] %vm322, %v321
    %s329 = scalar_lea.vmem [#allocation0], 51
    %330 = vst.msk [vmem:[%s329] sm:$0xc0] %vm322, %v321
    %s331 = scalar_lea.vmem %s0, 4
    %v332 = vld [vmem:[%s331] sm:$0x1]
    %s333 = scalar_lea.vmem %s0, 67
    %v334 = vld [vmem:[%s333] sm:$0x2]
    %vm335 = vcmask 1041409
    %v336 = vsel %vm335, %v334, %v332
    %s337 = scalar_lea.vmem %s0, 372
    %s338 = smov 12
    %v339 = vld [vmem:[%s337] ss:$-120 sm:%s338]
    %vm340 = vcmask 1043458
    %v341 = vsel %vm340, %v339, %v336
    %s342 = scalar_lea.vmem %s0, 72
    %v343 = vld [vmem:[%s342] sm:$0x10]
    %vm344 = vcmask 1044484
    %v345 = vsel %vm344, %v343, %v341
    %s346 = scalar_lea.vmem %s0, 740
    %s347 = smov 96
    %v348 = vld [vmem:[%s346] ss:$-120 sm:%s347]
    %vm349 = vcmask 1046533
    %v350 = vsel %vm349, %v348, %v345
    %s351 = scalar_lea.vmem %s0, 77
    %v352 = vld [vmem:[%s351] sm:$0x80]
    %vm353 = vcmask 1047559
    %v354 = vsel %vm353, %v352, %v350
    %355 = vrot.lane.b32.xlu0 %v354, 64
    %v356 = vpop.permute.xlu0 %355
    %vm357 = vcmask 654848
    %358 = vst.msk [vmem:[#allocation0] sm:$0x7] %vm357, %v356
    %s359 = scalar_lea.vmem [#allocation0], 5
    %360 = vst.msk [vmem:[%s359] sm:$0x38] %vm357, %v356
    %s361 = scalar_lea.vmem [#allocation0], 10
    %362 = vst.msk [vmem:[%s361] sm:$0xc0] %vm357, %v356
    %s363 = scalar_lea.vmem %s0, 36
    %v364 = vld [vmem:[%s363] sm:$0x1]
    %s365 = scalar_lea.vmem %s0, 99
    %v366 = vld [vmem:[%s365] sm:$0x2]
    %vm367 = vcmask 1041409
    %v368 = vsel %vm367, %v366, %v364
    %s369 = scalar_lea.vmem %s0, 404
    %s370 = smov 12
    %v371 = vld [vmem:[%s369] ss:$-120 sm:%s370]
    %vm372 = vcmask 1043458
    %v373 = vsel %vm372, %v371, %v368
    %s374 = scalar_lea.vmem %s0, 104
    %v375 = vld [vmem:[%s374] sm:$0x10]
    %vm376 = vcmask 1044484
    %v377 = vsel %vm376, %v375, %v373
    %s378 = scalar_lea.vmem %s0, 772
    %s379 = smov 96
    %v380 = vld [vmem:[%s378] ss:$-120 sm:%s379]
    %vm381 = vcmask 1046533
    %v382 = vsel %vm381, %v380, %v377
    %s383 = scalar_lea.vmem %s0, 109
    %v384 = vld [vmem:[%s383] sm:$0x80]
    %vm385 = vcmask 1047559
    %v386 = vsel %vm385, %v384, %v382
    %387 = vrot.lane.b32.xlu0 %v386, 64
    %v388 = vpop.permute.xlu0 %387
    %vm389 = vcmask 654848
    %s390 = scalar_lea.vmem [#allocation0], 32
    %391 = vst.msk [vmem:[%s390] sm:$0x7] %vm389, %v388
    %s392 = scalar_lea.vmem [#allocation0], 37
    %393 = vst.msk [vmem:[%s392] sm:$0x38] %vm389, %v388
    %s394 = scalar_lea.vmem [#allocation0], 42
    %395 = vst.msk [vmem:[%s394] sm:$0xc0] %vm389, %v388
    %s396 = scalar_lea.vmem %s0, 148
    %s397 = smov 3
    %v398 = vld [vmem:[%s396] ss:$-120 sm:%s397]
    %s399 = scalar_lea.vmem %s0, 90
    %v400 = vld [vmem:[%s399] sm:$0x4]
    %vm401 = vcmask 1042434
    %v402 = vsel %vm401, %v400, %v398
    %s403 = scalar_lea.vmem %s0, 84
    %s404 = smov 24
    %v405 = vld [vmem:[%s403] ss:$24 sm:%s404]
    %vm406 = vcmask 1044483
    %v407 = vsel %vm406, %v405, %v402
    %s408 = scalar_lea.vmem %s0, 55
    %v409 = vld [vmem:[%s408] sm:$0x20]
    %vm410 = vcmask 1045509
    %v411 = vsel %vm410, %v409, %v407
    %s412 = scalar_lea.vmem %s0, 118
    %v413 = vld [vmem:[%s412] sm:$0x40]
    %vm414 = vcmask 1046534
    %v415 = vsel %vm414, %v413, %v411
    %s416 = scalar_lea.vmem %s0, 181
    %v417 = vld [vmem:[%s416] sm:$0x80]
    %vm418 = vcmask 1047559
    %v419 = vsel %vm418, %v417, %v415
    %420 = vrot.lane.b32.xlu0 %v419, 64
    %v421 = vpop.permute.xlu0 %420
    %vm422 = vcmask 654848
    %s423 = scalar_lea.vmem [#allocation0], 18
    %424 = vst.msk [vmem:[%s423] ss:$6 sm:$0x3] %vm422, %v421
    %s425 = scalar_lea.vmem [#allocation0], 23
    %426 = vst.msk [vmem:[%s425] sm:$0xc] %vm422, %v421
    %s427 = scalar_lea.vmem [#allocation0], 26
    %428 = vst.msk [vmem:[%s427] ss:$6 sm:$0x30] %vm422, %v421
    %s429 = scalar_lea.vmem [#allocation0], 51
    %430 = vst.msk [vmem:[%s429] sm:$0xc0] %vm422, %v421
    %s431 = scalar_lea.vmem %s0, 3
    %v432 = vld [vmem:[%s431] sm:$0x1]
    %s433 = scalar_lea.vmem %s0, 66
    %v434 = vld [vmem:[%s433] sm:$0x2]
    %vm435 = vcmask 1041409
    %v436 = vsel %vm435, %v434, %v432
    %s437 = scalar_lea.vmem %s0, 371
    %s438 = smov 12
    %v439 = vld [vmem:[%s437] ss:$-120 sm:%s438]
    %vm440 = vcmask 1043458
    %v441 = vsel %vm440, %v439, %v436
    %s442 = scalar_lea.vmem %s0, 71
    %v443 = vld [vmem:[%s442] sm:$0x10]
    %vm444 = vcmask 1044484
    %v445 = vsel %vm444, %v443, %v441
    %s446 = scalar_lea.vmem %s0, 739
    %s447 = smov 96
    %v448 = vld [vmem:[%s446] ss:$-120 sm:%s447]
    %vm449 = vcmask 1046533
    %v450 = vsel %vm449, %v448, %v445
    %s451 = scalar_lea.vmem %s0, 76
    %v452 = vld [vmem:[%s451] sm:$0x80]
    %vm453 = vcmask 1047559
    %v454 = vsel %vm453, %v452, %v450
    %455 = vrot.lane.b32.xlu0 %v454, 48
    %v456 = vpop.permute.xlu0 %455
    %vm457 = vcmask 523648
    %458 = vst.msk [vmem:[#allocation0] sm:$0x7] %vm457, %v456
    %s459 = scalar_lea.vmem [#allocation0], 5
    %460 = vst.msk [vmem:[%s459] sm:$0x38] %vm457, %v456
    %s461 = scalar_lea.vmem [#allocation0], 10
    %462 = vst.msk [vmem:[%s461] sm:$0xc0] %vm457, %v456
    %s463 = scalar_lea.vmem %s0, 35
    %v464 = vld [vmem:[%s463] sm:$0x1]
    %s465 = scalar_lea.vmem %s0, 98
    %v466 = vld [vmem:[%s465] sm:$0x2]
    %vm467 = vcmask 1041409
    %v468 = vsel %vm467, %v466, %v464
    %s469 = scalar_lea.vmem %s0, 403
    %s470 = smov 12
    %v471 = vld [vmem:[%s469] ss:$-120 sm:%s470]
    %vm472 = vcmask 1043458
    %v473 = vsel %vm472, %v471, %v468
    %s474 = scalar_lea.vmem %s0, 103
    %v475 = vld [vmem:[%s474] sm:$0x10]
    %vm476 = vcmask 1044484
    %v477 = vsel %vm476, %v475, %v473
    %s478 = scalar_lea.vmem %s0, 771
    %s479 = smov 96
    %v480 = vld [vmem:[%s478] ss:$-120 sm:%s479]
    %vm481 = vcmask 1046533
    %v482 = vsel %vm481, %v480, %v477
    %s483 = scalar_lea.vmem %s0, 108
    %v484 = vld [vmem:[%s483] sm:$0x80]
    %vm485 = vcmask 1047559
    %v486 = vsel %vm485, %v484, %v482
    %487 = vrot.lane.b32.xlu0 %v486, 48
    %v488 = vpop.permute.xlu0 %487
    %vm489 = vcmask 523648
    %s490 = scalar_lea.vmem [#allocation0], 32
    %491 = vst.msk [vmem:[%s490] sm:$0x7] %vm489, %v488
    %s492 = scalar_lea.vmem [#allocation0], 37
    %493 = vst.msk [vmem:[%s492] sm:$0x38] %vm489, %v488
    %s494 = scalar_lea.vmem [#allocation0], 42
    %495 = vst.msk [vmem:[%s494] sm:$0xc0] %vm489, %v488
    %s496 = scalar_lea.vmem %s0, 147
    %s497 = smov 3
    %v498 = vld [vmem:[%s496] ss:$-120 sm:%s497]
    %s499 = scalar_lea.vmem %s0, 89
    %v500 = vld [vmem:[%s499] sm:$0x4]
    %vm501 = vcmask 1042434
    %v502 = vsel %vm501, %v500, %v498
    %s503 = scalar_lea.vmem %s0, 83
    %s504 = smov 24
    %v505 = vld [vmem:[%s503] ss:$24 sm:%s504]
    %vm506 = vcmask 1044483
    %v507 = vsel %vm506, %v505, %v502
    %s508 = scalar_lea.vmem %s0, 54
    %v509 = vld [vmem:[%s508] sm:$0x20]
    %vm510 = vcmask 1045509
    %v511 = vsel %vm510, %v509, %v507
    %s512 = scalar_lea.vmem %s0, 117
    %v513 = vld [vmem:[%s512] sm:$0x40]
    %vm514 = vcmask 1046534
    %v515 = vsel %vm514, %v513, %v511
    %s516 = scalar_lea.vmem %s0, 180
    %v517 = vld [vmem:[%s516] sm:$0x80]
    %vm518 = vcmask 1047559
    %v519 = vsel %vm518, %v517, %v515
    %520 = vrot.lane.b32.xlu0 %v519, 48
    %v521 = vpop.permute.xlu0 %520
    %vm522 = vcmask 523648
    %s523 = scalar_lea.vmem [#allocation0], 18
    %524 = vst.msk [vmem:[%s523] ss:$6 sm:$0x3] %vm522, %v521
    %s525 = scalar_lea.vmem [#allocation0], 23
    %526 = vst.msk [vmem:[%s525] sm:$0xc] %vm522, %v521
    %s527 = scalar_lea.vmem [#allocation0], 26
    %528 = vst.msk [vmem:[%s527] ss:$6 sm:$0x30] %vm522, %v521
    %s529 = scalar_lea.vmem [#allocation0], 51
    %530 = vst.msk [vmem:[%s529] sm:$0xc0] %vm522, %v521
    %s531 = scalar_lea.vmem %s0, 2
    %v532 = vld [vmem:[%s531] sm:$0x1]
    %s533 = scalar_lea.vmem %s0, 65
    %v534 = vld [vmem:[%s533] sm:$0x2]
    %vm535 = vcmask 1041409
    %v536 = vsel %vm535, %v534, %v532
    %s537 = scalar_lea.vmem %s0, 370
    %s538 = smov 12
    %v539 = vld [vmem:[%s537] ss:$-120 sm:%s538]
    %vm540 = vcmask 1043458
    %v541 = vsel %vm540, %v539, %v536
    %s542 = scalar_lea.vmem %s0, 70
    %v543 = vld [vmem:[%s542] sm:$0x10]
    %vm544 = vcmask 1044484
    %v545 = vsel %vm544, %v543, %v541
    %s546 = scalar_lea.vmem %s0, 738
    %s547 = smov 96
    %v548 = vld [vmem:[%s546] ss:$-120 sm:%s547]
    %vm549 = vcmask 1046533
    %v550 = vsel %vm549, %v548, %v545
    %s551 = scalar_lea.vmem %s0, 75
    %v552 = vld [vmem:[%s551] sm:$0x80]
    %vm553 = vcmask 1047559
    %v554 = vsel %vm553, %v552, %v550
    %555 = vrot.lane.b32.xlu0 %v554, 32
    %v556 = vpop.permute.xlu0 %555
    %vm557 = vcmask 392448
    %558 = vst.msk [vmem:[#allocation0] sm:$0x7] %vm557, %v556
    %s559 = scalar_lea.vmem [#allocation0], 5
    %560 = vst.msk [vmem:[%s559] sm:$0x38] %vm557, %v556
    %s561 = scalar_lea.vmem [#allocation0], 10
    %562 = vst.msk [vmem:[%s561] sm:$0xc0] %vm557, %v556
    %s563 = scalar_lea.vmem %s0, 34
    %v564 = vld [vmem:[%s563] sm:$0x1]
    %s565 = scalar_lea.vmem %s0, 97
    %v566 = vld [vmem:[%s565] sm:$0x2]
    %vm567 = vcmask 1041409
    %v568 = vsel %vm567, %v566, %v564
    %s569 = scalar_lea.vmem %s0, 402
    %s570 = smov 12
    %v571 = vld [vmem:[%s569] ss:$-120 sm:%s570]
    %vm572 = vcmask 1043458
    %v573 = vsel %vm572, %v571, %v568
    %s574 = scalar_lea.vmem %s0, 102
    %v575 = vld [vmem:[%s574] sm:$0x10]
    %vm576 = vcmask 1044484
    %v577 = vsel %vm576, %v575, %v573
    %s578 = scalar_lea.vmem %s0, 770
    %s579 = smov 96
    %v580 = vld [vmem:[%s578] ss:$-120 sm:%s579]
    %vm581 = vcmask 1046533
    %v582 = vsel %vm581, %v580, %v577
    %s583 = scalar_lea.vmem %s0, 107
    %v584 = vld [vmem:[%s583] sm:$0x80]
    %vm585 = vcmask 1047559
    %v586 = vsel %vm585, %v584, %v582
    %587 = vrot.lane.b32.xlu0 %v586, 32
    %v588 = vpop.permute.xlu0 %587
    %vm589 = vcmask 392448
    %s590 = scalar_lea.vmem [#allocation0], 32
    %591 = vst.msk [vmem:[%s590] sm:$0x7] %vm589, %v588
    %s592 = scalar_lea.vmem [#allocation0], 37
    %593 = vst.msk [vmem:[%s592] sm:$0x38] %vm589, %v588
    %s594 = scalar_lea.vmem [#allocation0], 42
    %595 = vst.msk [vmem:[%s594] sm:$0xc0] %vm589, %v588
    %s596 = scalar_lea.vmem %s0, 146
    %s597 = smov 3
    %v598 = vld [vmem:[%s596] ss:$-120 sm:%s597]
    %s599 = scalar_lea.vmem %s0, 88
    %v600 = vld [vmem:[%s599] sm:$0x4]
    %vm601 = vcmask 1042434
    %v602 = vsel %vm601, %v600, %v598
    %s603 = scalar_lea.vmem %s0, 82
    %s604 = smov 24
    %v605 = vld [vmem:[%s603] ss:$24 sm:%s604]
    %vm606 = vcmask 1044483
    %v607 = vsel %vm606, %v605, %v602
    %s608 = scalar_lea.vmem %s0, 53
    %v609 = vld [vmem:[%s608] sm:$0x20]
    %vm610 = vcmask 1045509
    %v611 = vsel %vm610, %v609, %v607
    %s612 = scalar_lea.vmem %s0, 116
    %v613 = vld [vmem:[%s612] sm:$0x40]
    %vm614 = vcmask 1046534
    %v615 = vsel %vm614, %v613, %v611
    %s616 = scalar_lea.vmem %s0, 179
    %v617 = vld [vmem:[%s616] sm:$0x80]
    %vm618 = vcmask 1047559
    %v619 = vsel %vm618, %v617, %v615
    %620 = vrot.lane.b32.xlu0 %v619, 32
    %v621 = vpop.permute.xlu0 %620
    %vm622 = vcmask 392448
    %s623 = scalar_lea.vmem [#allocation0], 18
    %624 = vst.msk [vmem:[%s623] ss:$6 sm:$0x3] %vm622, %v621
    %s625 = scalar_lea.vmem [#allocation0], 23
    %626 = vst.msk [vmem:[%s625] sm:$0xc] %vm622, %v621
    %s627 = scalar_lea.vmem [#allocation0], 26
    %628 = vst.msk [vmem:[%s627] ss:$6 sm:$0x30] %vm622, %v621
    %s629 = scalar_lea.vmem [#allocation0], 51
    %630 = vst.msk [vmem:[%s629] sm:$0xc0] %vm622, %v621
    %s631 = scalar_lea.vmem %s0, 1
    %v632 = vld [vmem:[%s631] sm:$0x1]
    %s633 = scalar_lea.vmem %s0, 64
    %v634 = vld [vmem:[%s633] sm:$0x2]
    %vm635 = vcmask 1041409
    %v636 = vsel %vm635, %v634, %v632
    %s637 = scalar_lea.vmem %s0, 369
    %s638 = smov 12
    %v639 = vld [vmem:[%s637] ss:$-120 sm:%s638]
    %vm640 = vcmask 1043458
    %v641 = vsel %vm640, %v639, %v636
    %s642 = scalar_lea.vmem %s0, 69
    %v643 = vld [vmem:[%s642] sm:$0x10]
    %vm644 = vcmask 1044484
    %v645 = vsel %vm644, %v643, %v641
    %s646 = scalar_lea.vmem %s0, 737
    %s647 = smov 96
    %v648 = vld [vmem:[%s646] ss:$-120 sm:%s647]
    %vm649 = vcmask 1046533
    %v650 = vsel %vm649, %v648, %v645
    %s651 = scalar_lea.vmem %s0, 74
    %v652 = vld [vmem:[%s651] sm:$0x80]
    %vm653 = vcmask 1047559
    %v654 = vsel %vm653, %v652, %v650
    %655 = vrot.lane.b32.xlu0 %v654, 16
    %v656 = vpop.permute.xlu0 %655
    %vm657 = vcmask 261248
    %658 = vst.msk [vmem:[#allocation0] sm:$0x7] %vm657, %v656
    %s659 = scalar_lea.vmem [#allocation0], 5
    %660 = vst.msk [vmem:[%s659] sm:$0x38] %vm657, %v656
    %s661 = scalar_lea.vmem [#allocation0], 10
    %662 = vst.msk [vmem:[%s661] sm:$0xc0] %vm657, %v656
    %s663 = scalar_lea.vmem %s0, 33
    %v664 = vld [vmem:[%s663] sm:$0x1]
    %s665 = scalar_lea.vmem %s0, 96
    %v666 = vld [vmem:[%s665] sm:$0x2]
    %vm667 = vcmask 1041409
    %v668 = vsel %vm667, %v666, %v664
    %s669 = scalar_lea.vmem %s0, 401
    %s670 = smov 12
    %v671 = vld [vmem:[%s669] ss:$-120 sm:%s670]
    %vm672 = vcmask 1043458
    %v673 = vsel %vm672, %v671, %v668
    %s674 = scalar_lea.vmem %s0, 101
    %v675 = vld [vmem:[%s674] sm:$0x10]
    %vm676 = vcmask 1044484
    %v677 = vsel %vm676, %v675, %v673
    %s678 = scalar_lea.vmem %s0, 769
    %s679 = smov 96
    %v680 = vld [vmem:[%s678] ss:$-120 sm:%s679]
    %vm681 = vcmask 1046533
    %v682 = vsel %vm681, %v680, %v677
    %s683 = scalar_lea.vmem %s0, 106
    %v684 = vld [vmem:[%s683] sm:$0x80]
    %vm685 = vcmask 1047559
    %v686 = vsel %vm685, %v684, %v682
    %687 = vrot.lane.b32.xlu0 %v686, 16
    %v688 = vpop.permute.xlu0 %687
    %vm689 = vcmask 261248
    %s690 = scalar_lea.vmem [#allocation0], 32
    %691 = vst.msk [vmem:[%s690] sm:$0x7] %vm689, %v688
    %s692 = scalar_lea.vmem [#allocation0], 37
    %693 = vst.msk [vmem:[%s692] sm:$0x38] %vm689, %v688
    %s694 = scalar_lea.vmem [#allocation0], 42
    %695 = vst.msk [vmem:[%s694] sm:$0xc0] %vm689, %v688
    %s696 = scalar_lea.vmem %s0, 145
    %s697 = smov 3
    %v698 = vld [vmem:[%s696] ss:$-120 sm:%s697]
    %s699 = scalar_lea.vmem %s0, 87
    %v700 = vld [vmem:[%s699] sm:$0x4]
    %vm701 = vcmask 1042434
    %v702 = vsel %vm701, %v700, %v698
    %s703 = scalar_lea.vmem %s0, 81
    %s704 = smov 24
    %v705 = vld [vmem:[%s703] ss:$24 sm:%s704]
    %vm706 = vcmask 1044483
    %v707 = vsel %vm706, %v705, %v702
    %s708 = scalar_lea.vmem %s0, 52
    %v709 = vld [vmem:[%s708] sm:$0x20]
    %vm710 = vcmask 1045509
    %v711 = vsel %vm710, %v709, %v707
    %s712 = scalar_lea.vmem %s0, 115
    %v713 = vld [vmem:[%s712] sm:$0x40]
    %vm714 = vcmask 1046534
    %v715 = vsel %vm714, %v713, %v711
    %s716 = scalar_lea.vmem %s0, 178
    %v717 = vld [vmem:[%s716] sm:$0x80]
    %vm718 = vcmask 1047559
    %v719 = vsel %vm718, %v717, %v715
    %720 = vrot.lane.b32.xlu0 %v719, 16
    %v721 = vpop.permute.xlu0 %720
    %vm722 = vcmask 261248
    %s723 = scalar_lea.vmem [#allocation0], 18
    %724 = vst.msk [vmem:[%s723] ss:$6 sm:$0x3] %vm722, %v721
    %s725 = scalar_lea.vmem [#allocation0], 23
    %726 = vst.msk [vmem:[%s725] sm:$0xc] %vm722, %v721
    %s727 = scalar_lea.vmem [#allocation0], 26
    %728 = vst.msk [vmem:[%s727] ss:$6 sm:$0x30] %vm722, %v721
    %s729 = scalar_lea.vmem [#allocation0], 51
    %730 = vst.msk [vmem:[%s729] sm:$0xc0] %vm722, %v721
    %s732 = sshll.u32 1, 4
    %s733 = ssub.s32 %s732, 1
    %v735 = vld [vmem:[#allocation0] sm:%s733]
    %s736 = sshll.u32 1, 4
    %s737 = ssub.s32 %s736, 1
    %738 = vst [vmem:[%s1] sm:%s737] %v735
    %s739 = scalar_lea.vmem [#allocation0], 8
    %v740 = vld [vmem:[%s739] sm:%s733]
    %s741 = sshll.u32 1, 4
    %s742 = ssub.s32 %s741, 1
    %s743 = scalar_lea.vmem %s1, 4
    %744 = vst [vmem:[%s743] sm:%s742] %v740
    %s745 = scalar_lea.vmem [#allocation0], 16
    %v746 = vld [vmem:[%s745] sm:%s733]
    %s747 = sshll.u32 1, 4
    %s748 = ssub.s32 %s747, 1
    %s749 = smul.addr 4, 2
    %s750 = scalar_lea.vmem %s1, %s749
    %751 = vst [vmem:[%s750] sm:%s748] %v746
    %s752 = scalar_lea.vmem [#allocation0], 24
    %v753 = vld [vmem:[%s752] sm:%s733]
    %s754 = sshll.u32 1, 4
    %s755 = ssub.s32 %s754, 1
    %s756 = smul.addr 4, 3
    %s757 = scalar_lea.vmem %s1, %s756
    %758 = vst [vmem:[%s757] sm:%s755] %v753
    %s759 = scalar_lea.vmem [#allocation0], 32
    %v760 = vld [vmem:[%s759] sm:%s733]
    %s761 = sshll.u32 1, 4
    %s762 = ssub.s32 %s761, 1
    %s763 = smul.addr 4, 4
    %s764 = scalar_lea.vmem %s1, %s763
    %765 = vst [vmem:[%s764] sm:%s762] %v760
    %s766 = scalar_lea.vmem [#allocation0], 40
    %v767 = vld [vmem:[%s766] sm:%s733]
    %s768 = sshll.u32 1, 4
    %s769 = ssub.s32 %s768, 1
    %s770 = smul.addr 4, 5
    %s771 = scalar_lea.vmem %s1, %s770
    %772 = vst [vmem:[%s771] sm:%s769] %v767
    %s773 = scalar_lea.vmem [#allocation0], 48
    %v774 = vld [vmem:[%s773] sm:%s733]
    %s775 = sshll.u32 1, 4
    %s776 = ssub.s32 %s775, 1
    %s777 = smul.addr 4, 6
    %s778 = scalar_lea.vmem %s1, %s777
    %779 = vst [vmem:[%s778] sm:%s776] %v774
    %s780 = scalar_lea.vmem [#allocation0], 56
    %v781 = vld [vmem:[%s780] sm:%s733]
    %s782 = sshll.u32 1, 4
    %s783 = ssub.s32 %s782, 1
    %s784 = smul.addr 4, 7
    %s785 = scalar_lea.vmem %s1, %s784
    %786 = vst [vmem:[%s785] sm:%s783] %v781

// kernel: shape_reg.1
$region0: #{shape_reg.1}
  #allocation0 [shape = 'u32[]', space=smem, size = 0x4, offset = 0x4, fixed_abs, tag = 'smem constant byte address 0x4 - core index']
  #allocation1 [shape = 'u32[144,128]{1,0:T(1,128)}', space=vmem, size = 0x12000, scoped, tag = 'internal scratch']
  %s0 = inlined_call_operand.vmem [shape: f32[3,16,128], index: 0, kind: input, shape index: {}]
  %s1 = inlined_call_operand.vmem [shape: f32[3,8,128], index: 1, kind: input, shape index: {}]
  %s2 = inlined_call_operand.vmem [shape: f32[2,8,128], index: 2, kind: output, shape index: {}]
  %s3 = sld [smem:[#allocation0]]
  $region83: #{shape_reg.1} parent=0
    _
  %s5 = ssub.s32 1, %s3
  %s6 = scalar_select 0, %s5, %s3
  $region1: #{shape_reg.1} parent=0
    #allocation2 [shape = 'u8[24576]{0}', space=vmem, size = 0x6000, scoped, tag = 'input window, operand 0']
    loop: start=0, step=1, limit=4
    $region2: #{shape_reg.1} parent=1 // loop_pre_header
      _
    $region3: #{shape_reg.1} parent=1 // loop_header
      %s8 = sphi 0, %s12
      %p9 = scmp.ge.s32.totalorder %s8, 4
      %s15 = sphi 0, %s27
      %s16 = sphi 0, %s23
      %s17 = sphi 0, %s15
      %s18 = sphi 0, %s16
      %s19 = sphi 0, %s17
      %s20 = sphi 0, %s18
      %s32 = sphi 0, %s34
      %s35 = sphi 0, %s32
      %s36 = sphi 0, %s35
      %s52 = sphi 0, %s36
      %s56 = sphi 0, %s56
      %s58 = sphi 0, %s56
      %s59 = sphi 0, %s58
      %s73 = sphi 0, %s59
      %s79 = sphi 0, %s81
      %s82 = sphi 0, %s79
      %s83 = sphi 0, %s82
      %s99 = sphi 0, %s83
    $region4: #{shape_reg.1} parent=1 // loop_header_branch
      %11 = sbr.rel (%p9) target = $region8
    $region5: #{shape_reg.1} parent=1 // loop_body
      %s13 = ssub.s32 %s8, 1
      %s14 = ssub.s32 %s8, 2
      %s21 = sadd.s32 1, %s16
      %p22 = scmp.ge.s32.totalorder %s21, 1
      %s23 = scalar_select %p22, 0, %s21
      %s24 = sadd.s32 1, %s15
      %s25 = scalar_select %p22, %s24, %s15
      %p26 = scmp.ge.s32.totalorder %s25, 2
      %s27 = scalar_select %p26, 0, %s25
      %s28 = sadd.s32 %s15, %s16
      %s29 = sadd.s32 %s27, %s23
      %s30 = ssub.s32 %s28, %s29
      %p31 = scmp.eq.s32.totalorder %s30, 0
      %s33 = sadd.s32 %s32, 1
      %s34 = scalar_select %p31, %s32, %s33
      %p37 = pneg %p31
      %p38 = scmp.eq.s32.totalorder %s8, 1
      %p39 = por %p37, %p38
      %p40 = scmp.ne.s32.totalorder %s32, %s35
      %p41 = scmp.eq.s32.totalorder %s8, 0
      %p42 = por %p40, %p41
      %p43 = scmp.ne.s32.totalorder %s32, %s35
      %p44 = scmp.eq.s32.totalorder %s13, 1
      %p45 = por %p43, %p44
      %p46 = scmp.ne.s32.totalorder %s35, %s36
      %p47 = scmp.eq.s32.totalorder %s13, 0
      %p48 = por %p46, %p47
      %p49 = scmp.ne.s32.totalorder %s35, %s36
      %p50 = scmp.eq.s32.totalorder %s14, 1
      %p51 = por %p49, %p50
      %p53 = scmp.ne.s32.totalorder %s36, %s52
      %p54 = scmp.eq.s32.totalorder %s14, 0
      %p55 = por %p53, %p54
      %s57 = sadd.s32 %s56, 1
      %p60 = scmp.eq.s32.totalorder %s8, 1
      %p61 = scmp.ne.s32.totalorder %s56, %s58
      %p62 = scmp.eq.s32.totalorder %s8, 0
      %p63 = por %p61, %p62
      %p64 = scmp.ne.s32.totalorder %s56, %s58
      %p65 = scmp.eq.s32.totalorder %s13, 1
      %p66 = por %p64, %p65
      %p67 = scmp.ne.s32.totalorder %s58, %s59
      %p68 = scmp.eq.s32.totalorder %s13, 0
      %p69 = por %p67, %p68
      %p70 = scmp.ne.s32.totalorder %s58, %s59
      %p71 = scmp.eq.s32.totalorder %s14, 1
      %p72 = por %p70, %p71
      %p74 = scmp.ne.s32.totalorder %s59, %s73
      %p75 = scmp.eq.s32.totalorder %s14, 0
      %p76 = por %p74, %p75
      %s77 = ssub.s32 %s15, %s27
      %p78 = scmp.eq.s32.totalorder %s77, 0
      %s80 = sadd.s32 %s79, 1
      %s81 = scalar_select %p78, %s79, %s80
      %p84 = pneg %p78
      %p85 = scmp.eq.s32.totalorder %s8, 1
      %p86 = por %p84, %p85
      %p87 = scmp.ne.s32.totalorder %s79, %s82
      %p88 = scmp.eq.s32.totalorder %s8, 0
      %p89 = por %p87, %p88
      %p90 = scmp.ne.s32.totalorder %s79, %s82
      %p91 = scmp.eq.s32.totalorder %s13, 1
      %p92 = por %p90, %p91
      %p93 = scmp.ne.s32.totalorder %s82, %s83
      %p94 = scmp.eq.s32.totalorder %s13, 0
      %p95 = por %p93, %p94
      %p96 = scmp.ne.s32.totalorder %s82, %s83
      %p97 = scmp.eq.s32.totalorder %s14, 1
      %p98 = por %p96, %p97
      %p100 = scmp.ne.s32.totalorder %s83, %s99
      %p101 = scmp.eq.s32.totalorder %s14, 0
      %p102 = por %p100, %p101
      %p103 = scmp.le.s32.totalorder 1, %s8
      %p104 = scmp.lt.s32.totalorder %s8, 3
      %p105 = pnand %p103, %p104
      %p106 = pneg %p105
      // Predicated region
      $region9: #{shape_reg.1} parent=5 // pred_check
        _
      $region10: #{shape_reg.1} parent=5 // pred_check_branch
        %108 = sbr.rel (%p105) target = $region12
      $region11: #{shape_reg.1} parent=5 // pred_region
        %s109 = ssub.s32 %s8, 1
        // Predicated region
        $region13: #{shape_reg.1} parent=11 // pred_check
          %p110 = pneg %p69
        $region14: #{shape_reg.1} parent=11 // pred_check_branch
          %112 = sbr.rel (%p110) target = $region16
        $region15: #{shape_reg.1} parent=11 // pred_region
          _
        $region16: #{shape_reg.1} parent=11 // pred_fallthru
          _
      $region12: #{shape_reg.1} parent=5 // pred_fallthru
        _
      %p113 = scmp.lt.s32.totalorder %s8, 2
      // Predicated region
      $region17: #{shape_reg.1} parent=5 // pred_check
        %p114 = pneg %p113
      $region18: #{shape_reg.1} parent=5 // pred_check_branch
        %116 = sbr.rel (%p114) target = $region20
      $region19: #{shape_reg.1} parent=5 // pred_region
        // Predicated region
        $region21: #{shape_reg.1} parent=19 // pred_check
          %p117 = pneg %p42
        $region22: #{shape_reg.1} parent=19 // pred_check_branch
          %119 = sbr.rel (%p117) target = $region24
        $region23: #{shape_reg.1} parent=19 // pred_region
          %s120 = sand.u32 %s32, 1
          %s121 = sand.u32 %s32, 1
          %s122 = smul.addr %s121, 24
          %s123 = scalar_lea.vmem [#allocation2], %s122
          %s124 = sadd.s32 %s15, %s16
          %s125 = smul.addr %s124, 8
          %s126 = scalar_lea.vmem %s0, %s125
          // Predicated region
          $region25: #{shape_reg.1} parent=23 // pred_check
            _
          $region26: #{shape_reg.1} parent=23 // pred_check_branch
            %128 = sbr.rel (0) target = $region28
          $region27: #{shape_reg.1} parent=23 // pred_region
            // Predicated region
            $region29: #{shape_reg.1} parent=27 // pred_check
              _
            $region30: #{shape_reg.1} parent=27 // pred_check_branch
              %130 = sbr.rel (0) target = $region32
            $region31: #{shape_reg.1} parent=27 // pred_region
              // Predicated region
              $region44: #{shape_reg.1} parent=31 // pred_check
                _
              $region45: #{shape_reg.1} parent=31 // pred_check_branch
                %150 = sbr.rel (0) target = $region47
              $region46: #{shape_reg.1} parent=31 // pred_region
                loop: start=0, step=1, limit=1
                $region48: #{shape_reg.1} parent=46 // loop_pre_header
                  _
                $region49: #{shape_reg.1} parent=46 // loop_header
                  %s152 = sphi 0, %s156
                  %p153 = scmp.ge.s32.totalorder %s152, 1
                  %s157 = sphi %s126, %s126
                  %s158 = sphi %s123, %s123
                $region50: #{shape_reg.1} parent=46 // loop_header_branch
                  %155 = sbr.rel (%p153) target = $region54
                $region51: #{shape_reg.1} parent=46 // loop_body
                  %v159 = vld [vmem:[%s157] sm:$0xff]
                  %160 = vst [vmem:[%s158] sm:$0xff] %v159
                  %v161 = vld [vmem:[%s157 + $0x10] sm:$0xff]
                  %162 = vst [vmem:[%s158 + $0x8] sm:$0xff] %v161
                  %v163 = vld [vmem:[%s157 + $0x20] sm:$0xff]
                  %164 = vst [vmem:[%s158 + $0x10] sm:$0xff] %v163
                $region52: #{shape_reg.1} parent=46 // loop_footer
                  %s156 = sadd.s32 1, %s152
                $region53: #{shape_reg.1} parent=46 // loop_footer_branch
                  %151 = sbr.rel target = $region49
                $region54: #{shape_reg.1} parent=46 // loop_exit
                  _
              $region47: #{shape_reg.1} parent=31 // pred_fallthru
                _
              // Predicated region
              $region55: #{shape_reg.1} parent=31 // pred_check
                _
              $region56: #{shape_reg.1} parent=31 // pred_check_branch
                %166 = sbr.rel target = $region58
              $region57: #{shape_reg.1} parent=31 // pred_region
                _
              $region58: #{shape_reg.1} parent=31 // pred_fallthru
                _
            $region32: #{shape_reg.1} parent=27 // pred_fallthru
              _
            // Predicated region
            $region33: #{shape_reg.1} parent=27 // pred_check
              _
            $region34: #{shape_reg.1} parent=27 // pred_check_branch
              %132 = sbr.rel target = $region36
            $region35: #{shape_reg.1} parent=27 // pred_region
              %s134 = ssub.s32 256, 1
              loop: start=0, step=1, limit=1
              $region37: #{shape_reg.1} parent=35 // loop_pre_header
                _
              $region38: #{shape_reg.1} parent=35 // loop_header
                %s136 = sphi 0, %s140
                %p137 = scmp.ge.s32.totalorder %s136, 1
                %s141 = sphi %s126, %s126
                %s142 = sphi %s123, %s123
              $region39: #{shape_reg.1} parent=35 // loop_header_branch
                %139 = sbr.rel (%p137) target = $region43
              $region40: #{shape_reg.1} parent=35 // loop_body
                %v143 = vld [vmem:[%s141] sm:%s134]
                %144 = vst [vmem:[%s142] sm:%s134] %v143
                %v145 = vld [vmem:[%s141 + $0x10] sm:%s134]
                %146 = vst [vmem:[%s142 + $0x8] sm:%s134] %v145
                %v147 = vld [vmem:[%s141 + $0x20] sm:%s134]
                %148 = vst [vmem:[%s142 + $0x10] sm:%s134] %v147
              $region41: #{shape_reg.1} parent=35 // loop_footer
                %s140 = sadd.s32 1, %s136
              $region42: #{shape_reg.1} parent=35 // loop_footer_branch
                %135 = sbr.rel target = $region38
              $region43: #{shape_reg.1} parent=35 // loop_exit
                _
            $region36: #{shape_reg.1} parent=27 // pred_fallthru
              _
          $region28: #{shape_reg.1} parent=23 // pred_fallthru
            _
          %167 = vnop
        $region24: #{shape_reg.1} parent=19 // pred_fallthru
          _
      $region20: #{shape_reg.1} parent=5 // pred_fallthru
        _
      %p168 = scmp.le.s32.totalorder 1, %s8
      %p169 = scmp.lt.s32.totalorder %s8, 3
      %p170 = pnand %p168, %p169
      %p171 = pneg %p170
      // Predicated region
      $region59: #{shape_reg.1} parent=5 // pred_check
        _
      $region60: #{shape_reg.1} parent=5 // pred_check_branch
        %173 = sbr.rel (%p170) target = $region62
      $region61: #{shape_reg.1} parent=5 // pred_region
        %s174 = ssub.s32 %s8, 1
        %s175 = sand.u32 %s35, 1
        %s176 = sand.u32 %s35, 1
        %s177 = smul.addr %s176, 24
        %s178 = scalar_lea.vmem [#allocation2], %s177
        // Predicated region
        $region63: #{shape_reg.1} parent=61 // pred_check
          %p179 = pneg %p48
        $region64: #{shape_reg.1} parent=61 // pred_check_branch
          %181 = sbr.rel (%p179) target = $region66
        $region65: #{shape_reg.1} parent=61 // pred_region
          _
        $region66: #{shape_reg.1} parent=61 // pred_fallthru
          _
        %s182 = sand.u32 %s35, 1
        %s183 = sand.u32 %s35, 1
        %s184 = smul.addr %s183, 24
        %s185 = scalar_lea.vmem [#allocation2], %s184
        %p186 = pneg %p48
        %p187 = pneg %p45
        %p188 = pneg %p69
        %p189 = pneg %p66
        %p190 = pneg %p95
        %p191 = pneg %p92
        %p192 = scmp.lt.s32.totalorder %s17, 1
        %s193 = scalar_select %p192, %s17, 1
        %s194 = smul.addr %s193, 8
        %s195 = scalar_lea.vmem %s2, %s194
        %s196 = sadd.s32 %s17, %s18
        %p197 = scmp.lt.s32.totalorder %s17, 1
        %s198 = scalar_select %p197, %s17, 1
        %s199 = smul.addr %s198, 8
        %s200 = scalar_lea.vmem %s2, %s199
        %p201 = scmp.eq.s32.totalorder %s18, 0
        // Predicated region
        $region67: #{shape_reg.1} parent=61 // pred_check
          %p202 = pneg %p201
        $region68: #{shape_reg.1} parent=61 // pred_check_branch
          %204 = sbr.rel (%p202) target = $region70
        $region69: #{shape_reg.1} parent=61 // pred_region
          %205 = vst [vmem:[%s200] sm:$0xff] 0.0
        $region70: #{shape_reg.1} parent=61 // pred_fallthru
          _
        %v206 = vld [vmem:[%s178] sm:$0xff]
        %v207 = vld [vmem:[%s1] sm:$0xff]
        %v208 = vsub.f32 %v206, %v207
        %v209 = vmul.f32 %v208, %v208
        %s210 = scalar_lea.vmem %s178, 8 [#allocation2]
        %v211 = vld [vmem:[%s210] sm:$0xff]
        %s212 = scalar_lea.vmem %s1, 8
        %v213 = vld [vmem:[%s212] sm:$0xff]
        %v214 = vsub.f32 %v211, %v213
        %v215 = vmul.f32 %v214, %v214
        %v216 = vadd.f32 %v209, %v215
        %s217 = scalar_lea.vmem %s178, 16 [#allocation2]
        %v218 = vld [vmem:[%s217] sm:$0xff]
        %s219 = scalar_lea.vmem %s1, 16
        %v220 = vld [vmem:[%s219] sm:$0xff]
        %v221 = vsub.f32 %v218, %v220
        %v222 = vmul.f32 %v221, %v221
        %v223 = vadd.f32 %v216, %v222
        %v224 = vrsqrt.pop %v223
        %v225 = vmul.f32 %v223, %v224
        %vm226 = vcmp.eq.f32.partialorder %v223, inf
        %v227 = vsel %vm226, %v223, %v225
        %vm228 = vcmp.eq.f32.partialorder %v223, 0.0
        %v229 = vand.u32 %v223, 2147483648
        %v230 = vsel %vm228, %v229, %v227
        %s231 = sadd.s32 %s17, %s18
        %s232 = smul.u32 %s231, 8
        %v233 = vlaneseq
        %v234 = vshrl.u32 %v233, 7
        %v235 = vstv %s232
        %v236 = vadd.s32 %v235, %v234
        %v237 = vmul.u32 %v236, 128
        %v238 = vlaneseq
        %v239 = vand.u32 %v238, 127
        %v240 = vadd.s32 %v237, %v239
        %vm241 = vcmp.lt.s32.totalorder %v240, 32
        %v242 = vsel %vm241, %v230, 0.0
        %v243 = vadd.f32 %v242, 0.0
        %v244 = vld [vmem:[%s200] sm:$0xff]
        %v245 = vadd.f32 %v244, %v243
        %246 = vst [vmem:[%s200] sm:$0xff] %v245
        %p247 = scmp.lt.s32.totalorder %s17, 1
        %s248 = scalar_select %p247, %s17, 1
        %s249 = smul.addr %s248, 8
        %s250 = scalar_lea.vmem %s2, %s249
        // Predicated region
        $region71: #{shape_reg.1} parent=61 // pred_check
          %p251 = pneg %p92
        $region72: #{shape_reg.1} parent=61 // pred_check_branch
          %253 = sbr.rel (%p251) target = $region74
        $region73: #{shape_reg.1} parent=61 // pred_region
          _
        $region74: #{shape_reg.1} parent=61 // pred_fallthru
          _
      $region62: #{shape_reg.1} parent=5 // pred_fallthru
        _
      %p254 = scmp.le.s32.totalorder 2, %s8
      // Predicated region
      $region75: #{shape_reg.1} parent=5 // pred_check
        %p255 = pneg %p254
      $region76: #{shape_reg.1} parent=5 // pred_check_branch
        %257 = sbr.rel (%p255) target = $region78
      $region77: #{shape_reg.1} parent=5 // pred_region
        %s258 = ssub.s32 %s8, 2
        // Predicated region
        $region79: #{shape_reg.1} parent=77 // pred_check
          %p259 = pneg %p98
        $region80: #{shape_reg.1} parent=77 // pred_check_branch
          %261 = sbr.rel (%p259) target = $region82
        $region81: #{shape_reg.1} parent=77 // pred_region
          %p262 = scmp.lt.s32.totalorder %s19, 1
          %s263 = scalar_select %p262, %s19, 1
          %s264 = smul.addr %s263, 8
          %s265 = scalar_lea.vmem %s2, %s264
        $region82: #{shape_reg.1} parent=77 // pred_fallthru
          _
      $region78: #{shape_reg.1} parent=5 // pred_fallthru
        _
    $region6: #{shape_reg.1} parent=1 // loop_footer
      %s12 = sadd.s32 1, %s8
    $region7: #{shape_reg.1} parent=1 // loop_footer_branch
      %7 = sbr.rel target = $region3
    $region8: #{shape_reg.1} parent=1 // loop_exit
      _

</llo_original>
